<compile_context>
chip_gen: v7x
topology: tpu7x:2x2x1
jax: 0.10.0
libtpu: 0.0.40
codegen_flags: <defaults>
</compile_context>

<pallas_src>
import math
from functools import partial

import jax
import jax.numpy as jnp
import numpy as np
from jax.experimental import pallas as pl
from jax.experimental.pallas import tpu as pltpu

# ----------------------------- configuration --------------------------------
Z_DIM = 32
W_DIM = 32
NUM_WS = 4
NUM_LAYERS = 8
LR_MULTIPLIER = 0.01
BATCH = 8
EPS = 1e-8
LRELU_SLOPE = 0.2
LRELU_GAIN = math.sqrt(2.0)  # def_gain of 'lrelu' in StyleGAN2 bias_act


# ------------------------------ Pallas kernel --------------------------------
def _mapping_kernel(z_ref, w_ref, b_ref, out_ref, *, num_layers, w_dim, out_cols):
    """z_ref: [TB, z_dim]; w_ref: [z_dim, (L-1)*w_dim + out_cols] (all gains
    pre-folded, last layer pre-tiled num_ws times); b_ref: [1, same cols];
    out_ref: [TB, out_cols] (lane-dense)."""
    x = z_ref[...].astype(jnp.float32)

    # normalize_2nd_moment over the feature axis (dim=1 in the torch code).
    mean_sq = jnp.mean(x * x, axis=-1, keepdims=True)
    x = x * jax.lax.rsqrt(mean_sq + EPS)

    # num_layers fully-connected layers. All gains (weight_gain, bias lr-gain,
    # sqrt(2) lrelu gain) are already folded into w_ref / b_ref, and the last
    # layer is pre-tiled along the out dim, so each layer is a single MXU
    # matmul + bias add + leaky relu, and the final matmul directly produces
    # the replicated lane-dense output.
    col = 0
    for i in range(num_layers):
        n = out_cols if i == num_layers - 1 else w_dim
        w = w_ref[:, col:col + n]                                  # [in, n]
        b = b_ref[:, col:col + n]                                  # [1, n]
        x = jnp.dot(x, w, preferred_element_type=jnp.float32) + b
        x = jnp.maximum(x, LRELU_SLOPE * x)                        # leaky relu 0.2
        col += n

    out_ref[...] = x.astype(out_ref.dtype)
    # TODO(synk): training-time w_avg EMA update and truncation (psi != 1) are
    # no-ops on the default eval forward path and are not implemented here.


# --------------------------- parameter preparation ---------------------------
def prepare_params(weights, biases, num_ws=NUM_WS):
    """One-time parameter packing (do at setup time, not per forward call).

    weights[i]: [out, in] (torch layout); biases[i]: [out].
    Returns:
      w_all: [in, (L-1)*w_dim + num_ws*w_dim]  lane-dense packed effective weights
      b_all: [1,  (L-1)*w_dim + num_ws*w_dim]  lane-dense packed effective biases
    Effective params fold weight_gain, bias lr-gain and the sqrt(2) lrelu gain;
    the last layer is tiled num_ws times so the kernel's last matmul emits the
    replicated output directly.
    """
    num_layers = len(weights)
    w_cols, b_cols = [], []
    for i, (w, b) in enumerate(zip(weights, biases)):
        w = jnp.asarray(w, jnp.float32)
        b = jnp.asarray(b, jnp.float32)
        assert w.shape[1] == Z_DIM and w.shape[0] == W_DIM
        wg = LR_MULTIPLIER / math.sqrt(w.shape[1])
        w_eff = w.T * (wg * LRELU_GAIN)                    # [in, out]
        b_eff = b * (LR_MULTIPLIER * LRELU_GAIN)           # [out]
        if i == num_layers - 1:
            w_eff = jnp.tile(w_eff, (1, num_ws))           # [in, num_ws*out]
            b_eff = jnp.tile(b_eff, (num_ws,))
        w_cols.append(w_eff)
        b_cols.append(b_eff)
    w_all = jnp.concatenate(w_cols, axis=1)                # [in, total_cols]
    b_all = jnp.concatenate(b_cols)[None, :]               # [1, total_cols]
    return w_all, b_all


# ------------------------------ JAX wrapper ----------------------------------
def mapping_network_forward(z, w_all, b_all, *, num_layers=NUM_LAYERS,
                            num_ws=NUM_WS, w_dim=W_DIM):
    """z: [B, z_dim]; w_all: [z_dim, total_cols]; b_all: [1, total_cols]."""
    batch, z_dim = z.shape
    out_cols = num_ws * w_dim
    total_cols = w_all.shape[1]
    assert total_cols == (num_layers - 1) * w_dim + out_cols

    # Batch tiling: weights stay resident (constant index_map); the batch axis
    # is "parallel" so large batches shard across v7x's two TensorCores. Rows
    # are independent, so padding of a ragged last tile is harmless (dropped
    # on store).
    block_b = batch if batch <= 256 else 256
    grid = (pl.cdiv(batch, block_b),)

    kernel = partial(_mapping_kernel, num_layers=num_layers, w_dim=w_dim,
                     out_cols=out_cols)

    out = pl.pallas_call(
        kernel,
        out_shape=jax.ShapeDtypeStruct((batch, out_cols), jnp.float32),
        grid_spec=pltpu.PrefetchScalarGridSpec(
            num_scalar_prefetch=0,
            grid=grid,
            in_specs=[
                pl.BlockSpec((block_b, z_dim), lambda i: (i, 0)),
                pl.BlockSpec((z_dim, total_cols), lambda i: (0, 0)),
                pl.BlockSpec((1, total_cols), lambda i: (0, 0)),
            ],
            out_specs=pl.BlockSpec((block_b, out_cols), lambda i: (i, 0)),
        ),
        compiler_params=pltpu.CompilerParams(
            dimension_semantics=("parallel",)),
    )(z, w_all, b_all)

    # Free reshape outside the kernel: [B, num_ws*w_dim] -> [B, num_ws, w_dim].
    return out.reshape(batch, num_ws, w_dim)


# --------------------------- pure-JAX reference -------------------------------
def mapping_network_ref(z, weights, biases):
    x = z.astype(jnp.float32)
    x = x * jax.lax.rsqrt(jnp.mean(x * x, axis=1, keepdims=True) + EPS)
    for w, b in zip(weights, biases):
        wg = LR_MULTIPLIER / math.sqrt(w.shape[1])
        x = x @ (w * wg).T + (b * LR_MULTIPLIER)[None, :]
        x = jnp.where(x >= 0.0, x, LRELU_SLOPE * x) * LRELU_GAIN
    return jnp.broadcast_to(x[:, None, :], (x.shape[0], NUM_WS, W_DIM))


# ------------------------------- main -----------------------------------------
if __name__ == "__main__":
    key = jax.random.PRNGKey(0)

    # Deterministic parameter init matching FullyConnectedLayer.__init__:
    #   weight = randn([out, in]) / lr_multiplier ; bias = zeros([out])
    feats = [Z_DIM] + [W_DIM] * NUM_LAYERS
    weights, biases = [], []
    for i in range(NUM_LAYERS):
        key, wk = jax.random.split(key)
        w = jax.random.normal(wk, (feats[i + 1], feats[i]), jnp.float32) / LR_MULTIPLIER
        weights.append(w)
        biases.append(jnp.zeros((feats[i + 1],), jnp.float32))

    key, zk = jax.random.split(key)
    z = jax.random.normal(zk, (BATCH, Z_DIM), jnp.float32)

    # One-time parameter packing (setup time).
    w_all, b_all = prepare_params(weights, biases)

    out = mapping_network_forward(z, w_all, b_all)
    out = jax.block_until_ready(out)

    ref = mapping_network_ref(z, weights, biases)
    assert out.shape == (BATCH, NUM_WS, W_DIM)
    np.testing.assert_allclose(np.asarray(out), np.asarray(ref), rtol=1e-4, atol=1e-4)

    print("KERNEL_OK")
</pallas_src>

<mosaic_0001>
module attributes {stable_mosaic.version = 11 : i64} {
  func.func @_mapping_kernel(%arg0: i32, %arg1: memref<8x32xf32, #tpu.memory_space<vmem>>, %arg2: memref<32x352xf32, #tpu.memory_space<vmem>>, %arg3: memref<1x352xf32, #tpu.memory_space<vmem>>, %arg4: memref<8x128xf32, #tpu.memory_space<vmem>>) attributes {dimension_semantics = [#tpu.dimension_semantics<parallel>], iteration_bounds = array<i64: 1>, scalar_prefetch = 0 : i64, scratch_operands = 0 : i64, tpu.core_type = #tpu.core_type<tc>, window_params = [{transform_indices = @transform_0, window_bounds = array<i64: 8, 32>}, {pipeline_mode = #tpu.pipeline_mode<synchronous>, transform_indices = @transform_1, window_bounds = array<i64: 32, 352>}, {pipeline_mode = #tpu.pipeline_mode<synchronous>, transform_indices = @transform_2, window_bounds = array<i64: 1, 352>}, {transform_indices = @transform_3, window_bounds = array<i64: 8, 128>}]} {
    %c0 = arith.constant 0 : index
    %c0_0 = arith.constant 0 : index
    %0 = vector.load %arg1[%c0, %c0_0] : memref<8x32xf32, #tpu.memory_space<vmem>>, vector<8x32xf32>
    %1 = arith.mulf %0, %0 : vector<8x32xf32>
    %cst = arith.constant dense<0.000000e+00> : vector<8xf32>
    %2 = vector.multi_reduction <add>, %1, %cst [1] : vector<8x32xf32> to vector<8xf32>
    %3 = vector.shape_cast %2 : vector<8xf32> to vector<8x1xf32>
    %cst_1 = arith.constant 3.200000e+01 : f32
    %4 = vector.broadcast %cst_1 : f32 to vector<8x1xf32>
    %5 = arith.divf %3, %4 : vector<8x1xf32>
    %cst_2 = arith.constant 9.99999993E-9 : f32
    %6 = vector.broadcast %cst_2 : f32 to vector<8x1xf32>
    %7 = arith.addf %5, %6 : vector<8x1xf32>
    %8 = math.rsqrt %7 : vector<8x1xf32>
    %9 = vector.broadcast %8 : vector<8x1xf32> to vector<8x32xf32>
    %10 = arith.mulf %0, %9 : vector<8x32xf32>
    %c0_3 = arith.constant 0 : index
    %c0_4 = arith.constant 0 : index
    %11 = vector.load %arg2[%c0_3, %c0_4] : memref<32x352xf32, #tpu.memory_space<vmem>>, vector<32x32xf32>
    %c0_5 = arith.constant 0 : index
    %c0_6 = arith.constant 0 : index
    %12 = vector.load %arg3[%c0_5, %c0_6] : memref<1x352xf32, #tpu.memory_space<vmem>>, vector<1x32xf32>
    %cst_7 = arith.constant dense<0.000000e+00> : vector<8x32xf32>
    %13 = tpu.matmul %10, %11, %cst_7 {dimension_numbers = #tpu.dot_dimension_numbers<[1], [0], [0], [1], [0, 0, 1, 1], [], []>} : vector<8x32xf32>, vector<32x32xf32>, vector<8x32xf32> -> vector<8x32xf32>
    %14 = vector.broadcast %12 : vector<1x32xf32> to vector<8x32xf32>
    %15 = arith.addf %13, %14 : vector<8x32xf32>
    %cst_8 = arith.constant 2.000000e-01 : f32
    %16 = vector.broadcast %cst_8 : f32 to vector<8x32xf32>
    %17 = arith.mulf %16, %15 : vector<8x32xf32>
    %18 = arith.maximumf %15, %17 : vector<8x32xf32>
    %c0_9 = arith.constant 0 : index
    %c32 = arith.constant 32 : index
    %19 = vector.load %arg2[%c0_9, %c32] : memref<32x352xf32, #tpu.memory_space<vmem>>, vector<32x32xf32>
    %c0_10 = arith.constant 0 : index
    %c32_11 = arith.constant 32 : index
    %20 = vector.load %arg3[%c0_10, %c32_11] : memref<1x352xf32, #tpu.memory_space<vmem>>, vector<1x32xf32>
    %cst_12 = arith.constant dense<0.000000e+00> : vector<8x32xf32>
    %21 = tpu.matmul %18, %19, %cst_12 {dimension_numbers = #tpu.dot_dimension_numbers<[1], [0], [0], [1], [0, 0, 1, 1], [], []>} : vector<8x32xf32>, vector<32x32xf32>, vector<8x32xf32> -> vector<8x32xf32>
    %22 = vector.broadcast %20 : vector<1x32xf32> to vector<8x32xf32>
    %23 = arith.addf %21, %22 : vector<8x32xf32>
    %cst_13 = arith.constant 2.000000e-01 : f32
    %24 = vector.broadcast %cst_13 : f32 to vector<8x32xf32>
    %25 = arith.mulf %24, %23 : vector<8x32xf32>
    %26 = arith.maximumf %23, %25 : vector<8x32xf32>
    %c0_14 = arith.constant 0 : index
    %c64 = arith.constant 64 : index
    %27 = vector.load %arg2[%c0_14, %c64] : memref<32x352xf32, #tpu.memory_space<vmem>>, vector<32x32xf32>
    %c0_15 = arith.constant 0 : index
    %c64_16 = arith.constant 64 : index
    %28 = vector.load %arg3[%c0_15, %c64_16] : memref<1x352xf32, #tpu.memory_space<vmem>>, vector<1x32xf32>
    %cst_17 = arith.constant dense<0.000000e+00> : vector<8x32xf32>
    %29 = tpu.matmul %26, %27, %cst_17 {dimension_numbers = #tpu.dot_dimension_numbers<[1], [0], [0], [1], [0, 0, 1, 1], [], []>} : vector<8x32xf32>, vector<32x32xf32>, vector<8x32xf32> -> vector<8x32xf32>
    %30 = vector.broadcast %28 : vector<1x32xf32> to vector<8x32xf32>
    %31 = arith.addf %29, %30 : vector<8x32xf32>
    %cst_18 = arith.constant 2.000000e-01 : f32
    %32 = vector.broadcast %cst_18 : f32 to vector<8x32xf32>
    %33 = arith.mulf %32, %31 : vector<8x32xf32>
    %34 = arith.maximumf %31, %33 : vector<8x32xf32>
    %c0_19 = arith.constant 0 : index
    %c96 = arith.constant 96 : index
    %35 = vector.load %arg2[%c0_19, %c96] : memref<32x352xf32, #tpu.memory_space<vmem>>, vector<32x32xf32>
    %c0_20 = arith.constant 0 : index
    %c96_21 = arith.constant 96 : index
    %36 = vector.load %arg3[%c0_20, %c96_21] : memref<1x352xf32, #tpu.memory_space<vmem>>, vector<1x32xf32>
    %cst_22 = arith.constant dense<0.000000e+00> : vector<8x32xf32>
    %37 = tpu.matmul %34, %35, %cst_22 {dimension_numbers = #tpu.dot_dimension_numbers<[1], [0], [0], [1], [0, 0, 1, 1], [], []>} : vector<8x32xf32>, vector<32x32xf32>, vector<8x32xf32> -> vector<8x32xf32>
    %38 = vector.broadcast %36 : vector<1x32xf32> to vector<8x32xf32>
    %39 = arith.addf %37, %38 : vector<8x32xf32>
    %cst_23 = arith.constant 2.000000e-01 : f32
    %40 = vector.broadcast %cst_23 : f32 to vector<8x32xf32>
    %41 = arith.mulf %40, %39 : vector<8x32xf32>
    %42 = arith.maximumf %39, %41 : vector<8x32xf32>
    %c0_24 = arith.constant 0 : index
    %c128 = arith.constant 128 : index
    %43 = vector.load %arg2[%c0_24, %c128] : memref<32x352xf32, #tpu.memory_space<vmem>>, vector<32x32xf32>
    %c0_25 = arith.constant 0 : index
    %c128_26 = arith.constant 128 : index
    %44 = vector.load %arg3[%c0_25, %c128_26] : memref<1x352xf32, #tpu.memory_space<vmem>>, vector<1x32xf32>
    %cst_27 = arith.constant dense<0.000000e+00> : vector<8x32xf32>
    %45 = tpu.matmul %42, %43, %cst_27 {dimension_numbers = #tpu.dot_dimension_numbers<[1], [0], [0], [1], [0, 0, 1, 1], [], []>} : vector<8x32xf32>, vector<32x32xf32>, vector<8x32xf32> -> vector<8x32xf32>
    %46 = vector.broadcast %44 : vector<1x32xf32> to vector<8x32xf32>
    %47 = arith.addf %45, %46 : vector<8x32xf32>
    %cst_28 = arith.constant 2.000000e-01 : f32
    %48 = vector.broadcast %cst_28 : f32 to vector<8x32xf32>
    %49 = arith.mulf %48, %47 : vector<8x32xf32>
    %50 = arith.maximumf %47, %49 : vector<8x32xf32>
    %c0_29 = arith.constant 0 : index
    %c160 = arith.constant 160 : index
    %51 = vector.load %arg2[%c0_29, %c160] : memref<32x352xf32, #tpu.memory_space<vmem>>, vector<32x32xf32>
    %c0_30 = arith.constant 0 : index
    %c160_31 = arith.constant 160 : index
    %52 = vector.load %arg3[%c0_30, %c160_31] : memref<1x352xf32, #tpu.memory_space<vmem>>, vector<1x32xf32>
    %cst_32 = arith.constant dense<0.000000e+00> : vector<8x32xf32>
    %53 = tpu.matmul %50, %51, %cst_32 {dimension_numbers = #tpu.dot_dimension_numbers<[1], [0], [0], [1], [0, 0, 1, 1], [], []>} : vector<8x32xf32>, vector<32x32xf32>, vector<8x32xf32> -> vector<8x32xf32>
    %54 = vector.broadcast %52 : vector<1x32xf32> to vector<8x32xf32>
    %55 = arith.addf %53, %54 : vector<8x32xf32>
    %cst_33 = arith.constant 2.000000e-01 : f32
    %56 = vector.broadcast %cst_33 : f32 to vector<8x32xf32>
    %57 = arith.mulf %56, %55 : vector<8x32xf32>
    %58 = arith.maximumf %55, %57 : vector<8x32xf32>
    %c0_34 = arith.constant 0 : index
    %c192 = arith.constant 192 : index
    %59 = vector.load %arg2[%c0_34, %c192] : memref<32x352xf32, #tpu.memory_space<vmem>>, vector<32x32xf32>
    %c0_35 = arith.constant 0 : index
    %c192_36 = arith.constant 192 : index
    %60 = vector.load %arg3[%c0_35, %c192_36] : memref<1x352xf32, #tpu.memory_space<vmem>>, vector<1x32xf32>
    %cst_37 = arith.constant dense<0.000000e+00> : vector<8x32xf32>
    %61 = tpu.matmul %58, %59, %cst_37 {dimension_numbers = #tpu.dot_dimension_numbers<[1], [0], [0], [1], [0, 0, 1, 1], [], []>} : vector<8x32xf32>, vector<32x32xf32>, vector<8x32xf32> -> vector<8x32xf32>
    %62 = vector.broadcast %60 : vector<1x32xf32> to vector<8x32xf32>
    %63 = arith.addf %61, %62 : vector<8x32xf32>
    %cst_38 = arith.constant 2.000000e-01 : f32
    %64 = vector.broadcast %cst_38 : f32 to vector<8x32xf32>
    %65 = arith.mulf %64, %63 : vector<8x32xf32>
    %66 = arith.maximumf %63, %65 : vector<8x32xf32>
    %c0_39 = arith.constant 0 : index
    %c224 = arith.constant 224 : index
    %67 = vector.load %arg2[%c0_39, %c224] : memref<32x352xf32, #tpu.memory_space<vmem>>, vector<32x128xf32>
    %c0_40 = arith.constant 0 : index
    %c224_41 = arith.constant 224 : index
    %68 = vector.load %arg3[%c0_40, %c224_41] : memref<1x352xf32, #tpu.memory_space<vmem>>, vector<1x128xf32>
    %cst_42 = arith.constant dense<0.000000e+00> : vector<8x128xf32>
    %69 = tpu.matmul %66, %67, %cst_42 {dimension_numbers = #tpu.dot_dimension_numbers<[1], [0], [0], [1], [0, 0, 1, 1], [], []>} : vector<8x32xf32>, vector<32x128xf32>, vector<8x128xf32> -> vector<8x128xf32>
    %70 = vector.broadcast %68 : vector<1x128xf32> to vector<8x128xf32>
    %71 = arith.addf %69, %70 : vector<8x128xf32>
    %cst_43 = arith.constant 2.000000e-01 : f32
    %72 = vector.broadcast %cst_43 : f32 to vector<8x128xf32>
    %73 = arith.mulf %72, %71 : vector<8x128xf32>
    %74 = arith.maximumf %71, %73 : vector<8x128xf32>
    %c0_44 = arith.constant 0 : index
    %c0_45 = arith.constant 0 : index
    %75 = vector.load %arg4[%c0_44, %c0_45] : memref<8x128xf32, #tpu.memory_space<vmem>>, vector<8x128xf32>
    tpu.vector_store %arg4[%c0_44, %c0_45], %74 {strides = array<i32>} : memref<8x128xf32, #tpu.memory_space<vmem>>, vector<8x128xf32>,
    return
  }
  func.func @transform_0(%arg0: i32) -> (i32, i32) {
    %c0_i32 = arith.constant 0 : i32
    %c0_i32_0 = arith.constant 0 : i32
    return %arg0, %c0_i32 : i32, i32
  }
  func.func @transform_1(%arg0: i32) -> (i32, i32) {
    %c0_i32 = arith.constant 0 : i32
    %c0_i32_0 = arith.constant 0 : i32
    %c0_i32_1 = arith.constant 0 : i32
    return %c0_i32, %c0_i32_0 : i32, i32
  }
  func.func @transform_2(%arg0: i32) -> (i32, i32) {
    %c0_i32 = arith.constant 0 : i32
    %c0_i32_0 = arith.constant 0 : i32
    %c0_i32_1 = arith.constant 0 : i32
    return %c0_i32, %c0_i32_0 : i32, i32
  }
  func.func @transform_3(%arg0: i32) -> (i32, i32) {
    %c0_i32 = arith.constant 0 : i32
    %c0_i32_0 = arith.constant 0 : i32
    return %arg0, %c0_i32 : i32, i32
  }
}

</mosaic_0001>

<llo_original>
// kernel: tpu_custom_call.1
$region0: #{tpu_custom_call.1}
  #allocation0 [shape = 'u32[]', space=smem, size = 0x4, offset = 0x4, fixed_abs, tag = 'smem constant byte address 0x4 - core index']
  #allocation1 [shape = 'u32[144,128]{1,0:T(1,128)}', space=vmem, size = 0x12000, scoped, tag = 'internal scratch']
  %s0 = inlined_call_operand.hbm [shape: f32[8,32], index: 0, kind: input, shape index: {}]
  %s1 = inlined_call_operand.hbm [shape: f32[32,352], index: 1, kind: input, shape index: {}]
  %s2 = inlined_call_operand.vmem [shape: f32[1,352], index: 2, kind: input, shape index: {}]
  %s3 = inlined_call_operand.hbm [shape: f32[8,128], index: 3, kind: output, shape index: {}]
  %s4 = sld [smem:[#allocation0]]
  $region30: #{tpu_custom_call.1} parent=0
    _
  %s6 = ssub.s32 1, %s4
  %s7 = scalar_select 0, %s6, %s4
  $region1: #{tpu_custom_call.1} parent=0
    #allocation2 [shape = 'u8[4096]{0}', space=vmem, size = 0x1000, scoped, tag = 'input window, operand 0, single buffered']
    #allocation3 [shape = 's32[1]{0}', space=sflag, size = 0x4, scoped, tag = 'scoped memory for tpu_custom_call.1']
    #allocation4 [shape = 's32[1]{0}', space=sflag, size = 0x4, scoped, tag = 'scoped memory for tpu_custom_call.1']
    #allocation5 [shape = 'u8[49152]{0}', space=vmem, size = 0xc000, scoped, tag = 'input window, operand 1, single buffered']
    #allocation6 [shape = 's32[1]{0}', space=sflag, size = 0x4, scoped, tag = 'scoped memory for tpu_custom_call.1']
    #allocation7 [shape = 'u8[4096]{0}', space=vmem, size = 0x1000, scoped, tag = 'output window, operand 0, single buffered']
    %8 = vsyncpa [#allocation3], 0
    %9 = vsyncpa [#allocation6], 0
    %10 = vsyncpa [#allocation4], 0
    // Predicated region
    $region2: #{tpu_custom_call.1} parent=1 // pred_check
      _
    $region3: #{tpu_custom_call.1} parent=1 // pred_check_branch
      %12 = sbr.rel (0) target = $region5
    $region4: #{tpu_custom_call.1} parent=1 // pred_region
      %s14 = ssub.s32 128, 128
      %15 = vsyncadd [#allocation3], %s14
      %s17 = sshll.u32 [#allocation2], 4
      %s18 = int_to_ptr.vmem [resolvable:$true] %s17
      %20 = dma.hbm_to_vmem [thread:$0]  %s0, 128, %s18, [#allocation3]
    $region5: #{tpu_custom_call.1} parent=1 // pred_fallthru
      _
    // Predicated region
    $region6: #{tpu_custom_call.1} parent=1 // pred_check
      _
    $region7: #{tpu_custom_call.1} parent=1 // pred_check_branch
      %22 = sbr.rel (0) target = $region9
    $region8: #{tpu_custom_call.1} parent=1 // pred_region
      %s24 = ssub.s32 1536, 1536
      %25 = vsyncadd [#allocation6], %s24
      %s26 = sshll.u32 [#allocation5], 4
      %s27 = int_to_ptr.vmem [resolvable:$true] %s26
      %32 = dma.hbm_to_vmem [thread:$0]  %s1, 1536, %s27, [#allocation6], 384, 384, 24
    $region9: #{tpu_custom_call.1} parent=1 // pred_fallthru
      _
    // Predicated region
    $region10: #{tpu_custom_call.1} parent=1 // pred_check
      _
    $region11: #{tpu_custom_call.1} parent=1 // pred_check_branch
      %34 = sbr.rel (0) target = $region13
    $region12: #{tpu_custom_call.1} parent=1 // pred_region
      _
    $region13: #{tpu_custom_call.1} parent=1 // pred_fallthru
      _
    // Predicated region
    $region14: #{tpu_custom_call.1} parent=1 // pred_check
      _
    $region15: #{tpu_custom_call.1} parent=1 // pred_check_branch
      %36 = sbr.rel (0) target = $region17
    $region16: #{tpu_custom_call.1} parent=1 // pred_region
      %37 = dma.done [#allocation3], 128
    $region17: #{tpu_custom_call.1} parent=1 // pred_fallthru
      _
    // Predicated region
    $region18: #{tpu_custom_call.1} parent=1 // pred_check
      _
    $region19: #{tpu_custom_call.1} parent=1 // pred_check_branch
      %39 = sbr.rel (0) target = $region21
    $region20: #{tpu_custom_call.1} parent=1 // pred_region
      %40 = dma.done [#allocation6], 1536
    $region21: #{tpu_custom_call.1} parent=1 // pred_fallthru
      _
    %v41 = vld [vmem:[#allocation2] sm:$0xff]
    %v42 = vmul.f32 %v41, %v41
    %vm43 = vcmask 261120
    %v44 = vsel %vm43, %v42, 0.0
    %45 = vadd.xlane.f32.xlu0 %v44
    %v46 = vpop.xlane.xlu0 %45
    %v47 = vrcp.pop 32.0
    %v48 = vmul.f32 %v46, %v47
    %v49 = vadd.f32 %v48, 1e-08
    %v50 = vrsqrt.pop %v49
    %v51 = vmul.f32 %v41, %v50
    %v52 = vld [vmem:[#allocation5] sm:$0xff]
    %v53 = vld [vmem:[#allocation5 + $0x18] sm:$0xff]
    %v54 = vld [vmem:[#allocation5 + $0x30] sm:$0xff]
    %v55 = vld [vmem:[#allocation5 + $0x48] sm:$0xff]
    %v56 = vld [vmem:[%s2] sm:$0x1]
    %v58 = vlaneseq
    %v59 = vshrl.u32 %v58, 7
    %v60 = vsub.s32 0, %v59
    %v61 = vrot.slane %v56, %v60
    %v64 = vsel %vm43, %v51, 0
    %66 = vmatprep.subr.mxu0 0.0
    %67 = vmatpush1.msra.mxu0 %v52
    %68 = vmatprep.subr.mxu0 0.0
    %69 = vmatpush1.msra.mxu0 %v53
    %70 = vmatprep.subr.mxu0 0.0
    %71 = vmatpush1.msra.mxu0 %v54
    %72 = vmatprep.subr.mxu0 0.0
    %73 = vmatpush1.msra.mxu0 %v55
    %74 = vmatprep.subr.mxu0 0.0
    %75 = vmatpush1.msra.mxu0 0.0
    %76 = vmatprep.subr.mxu0 0.0
    %77 = vmatpush1.msra.mxu0 0.0
    %78 = vmatprep.subr.mxu0 0.0
    %79 = vmatpush1.msra.mxu0 0.0
    %80 = vmatprep.subr.mxu0 0.0
    %81 = vmatpush1.msra.mxu0 0.0
    %82 = vmatprep.subr.mxu0 0.0
    %83 = vmatpush1.msra.mxu0 0.0
    %84 = vmatprep.subr.mxu0 0.0
    %85 = vmatpush1.msra.mxu0 0.0
    %86 = vmatprep.subr.mxu0 0.0
    %87 = vmatpush1.msra.mxu0 0.0
    %88 = vmatprep.subr.mxu0 0.0
    %89 = vmatpush1.msra.mxu0 0.0
    %90 = vmatprep.subr.mxu0 0.0
    %91 = vmatpush1.msra.mxu0 0.0
    %92 = vmatprep.subr.mxu0 0.0
    %93 = vmatpush1.msra.mxu0 0.0
    %94 = vmatprep.subr.mxu0 0.0
    %95 = vmatpush1.msra.mxu0 0.0
    %96 = vmatprep.subr.mxu0 0.0
    %97 = vmatpush1.msra.mxu0 0.0
    %98 = vmatprep.subr.mxu0 0.0
    %99 = vmatpush1.msra.mxu0 0.0
    %100 = vmatprep.subr.mxu0 0.0
    %101 = vmatpush1.msra.mxu0 0.0
    %102 = vmatprep.subr.mxu0 0.0
    %103 = vmatpush1.msra.mxu0 0.0
    %104 = vmatprep.subr.mxu0 0.0
    %105 = vmatpush1.msra.mxu0 0.0
    %106 = vmatprep.subr.mxu0 0.0
    %107 = vmatpush1.msra.mxu0 0.0
    %108 = vmatprep.subr.mxu0 0.0
    %109 = vmatpush1.msra.mxu0 0.0
    %110 = vmatprep.subr.mxu0 0.0
    %111 = vmatpush1.msra.mxu0 0.0
    %112 = vmatprep.subr.mxu0 0.0
    %113 = vmatpush1.msra.mxu0 0.0
    %114 = vmatprep.subr.mxu0 0.0
    %115 = vmatpush1.msra.mxu0 0.0
    %116 = vmatprep.subr.mxu0 0.0
    %117 = vmatpush1.msra.mxu0 0.0
    %118 = vmatprep.subr.mxu0 0.0
    %119 = vmatpush1.msra.mxu0 0.0
    %120 = vmatprep.subr.mxu0 0.0
    %121 = vmatpush1.msra.mxu0 0.0
    %122 = vmatprep.subr.mxu0 0.0
    %123 = vmatpush1.msra.mxu0 0.0
    %124 = vmatprep.subr.mxu0 0.0
    %125 = vmatpush1.msra.mxu0 0.0
    %126 = vmatprep.subr.mxu0 0.0
    %127 = vmatpush1.msra.mxu0 0.0
    %128 = vmatprep.subr.mxu0 0.0
    %129 = vmatpush1.msra.mxu0 0.0
    %130 = vmatprep.mubr.f32.mxu0 0.0
    %131 = vmatmul.mubr.f32.gmra.mrb[0].mxu0 %v64
    %v132 = vpop.f32.mrb[0].mxu0
    %v133 = vadd.f32 %v61, %v132
    %v134 = vpop.f32.mrb[0].mxu0
    %135 = vdwg.mxu0
    %v136 = vmul.f32 %v133, 0.2
    %v137 = vmax.f32 %v133, %v136
    %142 = vrot.lane.b32.xlu0 %v52, 96
    %v143 = vpop.permute.xlu0 %142
    %144 = vrot.lane.b32.xlu0 %v53, 96
    %v145 = vpop.permute.xlu0 %144
    %146 = vrot.lane.b32.xlu0 %v54, 96
    %v147 = vpop.permute.xlu0 %146
    %148 = vrot.lane.b32.xlu0 %v55, 96
    %v149 = vpop.permute.xlu0 %148
    %154 = vrot.lane.b32.xlu0 %v61, 96
    %v155 = vpop.permute.xlu0 %154
    %v158 = vsel %vm43, %v137, 0
    %160 = vmatprep.subr.mxu0 0.0
    %161 = vmatpush1.msra.mxu0 %v143
    %162 = vmatprep.subr.mxu0 0.0
    %163 = vmatpush1.msra.mxu0 %v145
    %164 = vmatprep.subr.mxu0 0.0
    %165 = vmatpush1.msra.mxu0 %v147
    %166 = vmatprep.subr.mxu0 0.0
    %167 = vmatpush1.msra.mxu0 %v149
    %168 = vmatprep.subr.mxu0 0.0
    %169 = vmatpush1.msra.mxu0 0.0
    %170 = vmatprep.subr.mxu0 0.0
    %171 = vmatpush1.msra.mxu0 0.0
    %172 = vmatprep.subr.mxu0 0.0
    %173 = vmatpush1.msra.mxu0 0.0
    %174 = vmatprep.subr.mxu0 0.0
    %175 = vmatpush1.msra.mxu0 0.0
    %176 = vmatprep.subr.mxu0 0.0
    %177 = vmatpush1.msra.mxu0 0.0
    %178 = vmatprep.subr.mxu0 0.0
    %179 = vmatpush1.msra.mxu0 0.0
    %180 = vmatprep.subr.mxu0 0.0
    %181 = vmatpush1.msra.mxu0 0.0
    %182 = vmatprep.subr.mxu0 0.0
    %183 = vmatpush1.msra.mxu0 0.0
    %184 = vmatprep.subr.mxu0 0.0
    %185 = vmatpush1.msra.mxu0 0.0
    %186 = vmatprep.subr.mxu0 0.0
    %187 = vmatpush1.msra.mxu0 0.0
    %188 = vmatprep.subr.mxu0 0.0
    %189 = vmatpush1.msra.mxu0 0.0
    %190 = vmatprep.subr.mxu0 0.0
    %191 = vmatpush1.msra.mxu0 0.0
    %192 = vmatprep.subr.mxu0 0.0
    %193 = vmatpush1.msra.mxu0 0.0
    %194 = vmatprep.subr.mxu0 0.0
    %195 = vmatpush1.msra.mxu0 0.0
    %196 = vmatprep.subr.mxu0 0.0
    %197 = vmatpush1.msra.mxu0 0.0
    %198 = vmatprep.subr.mxu0 0.0
    %199 = vmatpush1.msra.mxu0 0.0
    %200 = vmatprep.subr.mxu0 0.0
    %201 = vmatpush1.msra.mxu0 0.0
    %202 = vmatprep.subr.mxu0 0.0
    %203 = vmatpush1.msra.mxu0 0.0
    %204 = vmatprep.subr.mxu0 0.0
    %205 = vmatpush1.msra.mxu0 0.0
    %206 = vmatprep.subr.mxu0 0.0
    %207 = vmatpush1.msra.mxu0 0.0
    %208 = vmatprep.subr.mxu0 0.0
    %209 = vmatpush1.msra.mxu0 0.0
    %210 = vmatprep.subr.mxu0 0.0
    %211 = vmatpush1.msra.mxu0 0.0
    %212 = vmatprep.subr.mxu0 0.0
    %213 = vmatpush1.msra.mxu0 0.0
    %214 = vmatprep.subr.mxu0 0.0
    %215 = vmatpush1.msra.mxu0 0.0
    %216 = vmatprep.subr.mxu0 0.0
    %217 = vmatpush1.msra.mxu0 0.0
    %218 = vmatprep.subr.mxu0 0.0
    %219 = vmatpush1.msra.mxu0 0.0
    %220 = vmatprep.subr.mxu0 0.0
    %221 = vmatpush1.msra.mxu0 0.0
    %222 = vmatprep.subr.mxu0 0.0
    %223 = vmatpush1.msra.mxu0 0.0
    %224 = vmatprep.mubr.f32.mxu0 0.0
    %225 = vmatmul.mubr.f32.gmra.mrb[0].mxu0 %v158
    %v226 = vpop.f32.mrb[0].mxu0
    %v227 = vadd.f32 %v155, %v226
    %v228 = vpop.f32.mrb[0].mxu0
    %229 = vdwg.mxu0
    %v230 = vmul.f32 %v227, 0.2
    %v231 = vmax.f32 %v227, %v230
    %232 = vrot.lane.b32.xlu0 %v52, 64
    %v233 = vpop.permute.xlu0 %232
    %234 = vrot.lane.b32.xlu0 %v53, 64
    %v235 = vpop.permute.xlu0 %234
    %236 = vrot.lane.b32.xlu0 %v54, 64
    %v237 = vpop.permute.xlu0 %236
    %238 = vrot.lane.b32.xlu0 %v55, 64
    %v239 = vpop.permute.xlu0 %238
    %244 = vrot.lane.b32.xlu0 %v61, 64
    %v245 = vpop.permute.xlu0 %244
    %v248 = vsel %vm43, %v231, 0
    %250 = vmatprep.subr.mxu0 0.0
    %251 = vmatpush1.msra.mxu0 %v233
    %252 = vmatprep.subr.mxu0 0.0
    %253 = vmatpush1.msra.mxu0 %v235
    %254 = vmatprep.subr.mxu0 0.0
    %255 = vmatpush1.msra.mxu0 %v237
    %256 = vmatprep.subr.mxu0 0.0
    %257 = vmatpush1.msra.mxu0 %v239
    %258 = vmatprep.subr.mxu0 0.0
    %259 = vmatpush1.msra.mxu0 0.0
    %260 = vmatprep.subr.mxu0 0.0
    %261 = vmatpush1.msra.mxu0 0.0
    %262 = vmatprep.subr.mxu0 0.0
    %263 = vmatpush1.msra.mxu0 0.0
    %264 = vmatprep.subr.mxu0 0.0
    %265 = vmatpush1.msra.mxu0 0.0
    %266 = vmatprep.subr.mxu0 0.0
    %267 = vmatpush1.msra.mxu0 0.0
    %268 = vmatprep.subr.mxu0 0.0
    %269 = vmatpush1.msra.mxu0 0.0
    %270 = vmatprep.subr.mxu0 0.0
    %271 = vmatpush1.msra.mxu0 0.0
    %272 = vmatprep.subr.mxu0 0.0
    %273 = vmatpush1.msra.mxu0 0.0
    %274 = vmatprep.subr.mxu0 0.0
    %275 = vmatpush1.msra.mxu0 0.0
    %276 = vmatprep.subr.mxu0 0.0
    %277 = vmatpush1.msra.mxu0 0.0
    %278 = vmatprep.subr.mxu0 0.0
    %279 = vmatpush1.msra.mxu0 0.0
    %280 = vmatprep.subr.mxu0 0.0
    %281 = vmatpush1.msra.mxu0 0.0
    %282 = vmatprep.subr.mxu0 0.0
    %283 = vmatpush1.msra.mxu0 0.0
    %284 = vmatprep.subr.mxu0 0.0
    %285 = vmatpush1.msra.mxu0 0.0
    %286 = vmatprep.subr.mxu0 0.0
    %287 = vmatpush1.msra.mxu0 0.0
    %288 = vmatprep.subr.mxu0 0.0
    %289 = vmatpush1.msra.mxu0 0.0
    %290 = vmatprep.subr.mxu0 0.0
    %291 = vmatpush1.msra.mxu0 0.0
    %292 = vmatprep.subr.mxu0 0.0
    %293 = vmatpush1.msra.mxu0 0.0
    %294 = vmatprep.subr.mxu0 0.0
    %295 = vmatpush1.msra.mxu0 0.0
    %296 = vmatprep.subr.mxu0 0.0
    %297 = vmatpush1.msra.mxu0 0.0
    %298 = vmatprep.subr.mxu0 0.0
    %299 = vmatpush1.msra.mxu0 0.0
    %300 = vmatprep.subr.mxu0 0.0
    %301 = vmatpush1.msra.mxu0 0.0
    %302 = vmatprep.subr.mxu0 0.0
    %303 = vmatpush1.msra.mxu0 0.0
    %304 = vmatprep.subr.mxu0 0.0
    %305 = vmatpush1.msra.mxu0 0.0
    %306 = vmatprep.subr.mxu0 0.0
    %307 = vmatpush1.msra.mxu0 0.0
    %308 = vmatprep.subr.mxu0 0.0
    %309 = vmatpush1.msra.mxu0 0.0
    %310 = vmatprep.subr.mxu0 0.0
    %311 = vmatpush1.msra.mxu0 0.0
    %312 = vmatprep.subr.mxu0 0.0
    %313 = vmatpush1.msra.mxu0 0.0
    %314 = vmatprep.mubr.f32.mxu0 0.0
    %315 = vmatmul.mubr.f32.gmra.mrb[0].mxu0 %v248
    %v316 = vpop.f32.mrb[0].mxu0
    %v317 = vadd.f32 %v245, %v316
    %v318 = vpop.f32.mrb[0].mxu0
    %319 = vdwg.mxu0
    %v320 = vmul.f32 %v317, 0.2
    %v321 = vmax.f32 %v317, %v320
    %322 = vrot.lane.b32.xlu0 %v52, 32
    %v323 = vpop.permute.xlu0 %322
    %324 = vrot.lane.b32.xlu0 %v53, 32
    %v325 = vpop.permute.xlu0 %324
    %326 = vrot.lane.b32.xlu0 %v54, 32
    %v327 = vpop.permute.xlu0 %326
    %328 = vrot.lane.b32.xlu0 %v55, 32
    %v329 = vpop.permute.xlu0 %328
    %334 = vrot.lane.b32.xlu0 %v61, 32
    %v335 = vpop.permute.xlu0 %334
    %v338 = vsel %vm43, %v321, 0
    %340 = vmatprep.subr.mxu0 0.0
    %341 = vmatpush1.msra.mxu0 %v323
    %342 = vmatprep.subr.mxu0 0.0
    %343 = vmatpush1.msra.mxu0 %v325
    %344 = vmatprep.subr.mxu0 0.0
    %345 = vmatpush1.msra.mxu0 %v327
    %346 = vmatprep.subr.mxu0 0.0
    %347 = vmatpush1.msra.mxu0 %v329
    %348 = vmatprep.subr.mxu0 0.0
    %349 = vmatpush1.msra.mxu0 0.0
    %350 = vmatprep.subr.mxu0 0.0
    %351 = vmatpush1.msra.mxu0 0.0
    %352 = vmatprep.subr.mxu0 0.0
    %353 = vmatpush1.msra.mxu0 0.0
    %354 = vmatprep.subr.mxu0 0.0
    %355 = vmatpush1.msra.mxu0 0.0
    %356 = vmatprep.subr.mxu0 0.0
    %357 = vmatpush1.msra.mxu0 0.0
    %358 = vmatprep.subr.mxu0 0.0
    %359 = vmatpush1.msra.mxu0 0.0
    %360 = vmatprep.subr.mxu0 0.0
    %361 = vmatpush1.msra.mxu0 0.0
    %362 = vmatprep.subr.mxu0 0.0
    %363 = vmatpush1.msra.mxu0 0.0
    %364 = vmatprep.subr.mxu0 0.0
    %365 = vmatpush1.msra.mxu0 0.0
    %366 = vmatprep.subr.mxu0 0.0
    %367 = vmatpush1.msra.mxu0 0.0
    %368 = vmatprep.subr.mxu0 0.0
    %369 = vmatpush1.msra.mxu0 0.0
    %370 = vmatprep.subr.mxu0 0.0
    %371 = vmatpush1.msra.mxu0 0.0
    %372 = vmatprep.subr.mxu0 0.0
    %373 = vmatpush1.msra.mxu0 0.0
    %374 = vmatprep.subr.mxu0 0.0
    %375 = vmatpush1.msra.mxu0 0.0
    %376 = vmatprep.subr.mxu0 0.0
    %377 = vmatpush1.msra.mxu0 0.0
    %378 = vmatprep.subr.mxu0 0.0
    %379 = vmatpush1.msra.mxu0 0.0
    %380 = vmatprep.subr.mxu0 0.0
    %381 = vmatpush1.msra.mxu0 0.0
    %382 = vmatprep.subr.mxu0 0.0
    %383 = vmatpush1.msra.mxu0 0.0
    %384 = vmatprep.subr.mxu0 0.0
    %385 = vmatpush1.msra.mxu0 0.0
    %386 = vmatprep.subr.mxu0 0.0
    %387 = vmatpush1.msra.mxu0 0.0
    %388 = vmatprep.subr.mxu0 0.0
    %389 = vmatpush1.msra.mxu0 0.0
    %390 = vmatprep.subr.mxu0 0.0
    %391 = vmatpush1.msra.mxu0 0.0
    %392 = vmatprep.subr.mxu0 0.0
    %393 = vmatpush1.msra.mxu0 0.0
    %394 = vmatprep.subr.mxu0 0.0
    %395 = vmatpush1.msra.mxu0 0.0
    %396 = vmatprep.subr.mxu0 0.0
    %397 = vmatpush1.msra.mxu0 0.0
    %398 = vmatprep.subr.mxu0 0.0
    %399 = vmatpush1.msra.mxu0 0.0
    %400 = vmatprep.subr.mxu0 0.0
    %401 = vmatpush1.msra.mxu0 0.0
    %402 = vmatprep.subr.mxu0 0.0
    %403 = vmatpush1.msra.mxu0 0.0
    %404 = vmatprep.mubr.f32.mxu0 0.0
    %405 = vmatmul.mubr.f32.gmra.mrb[0].mxu0 %v338
    %v406 = vpop.f32.mrb[0].mxu0
    %v407 = vadd.f32 %v335, %v406
    %v408 = vpop.f32.mrb[0].mxu0
    %409 = vdwg.mxu0
    %v410 = vmul.f32 %v407, 0.2
    %v411 = vmax.f32 %v407, %v410
    %v412 = vld [vmem:[#allocation5 + $0x8] sm:$0xff]
    %v413 = vld [vmem:[#allocation5 + $0x20] sm:$0xff]
    %v414 = vld [vmem:[#allocation5 + $0x38] sm:$0xff]
    %v415 = vld [vmem:[#allocation5 + $0x50] sm:$0xff]
    %v416 = vld [vmem:[%s2 + $0x1] sm:$0x1]
    %v418 = vlaneseq
    %v419 = vshrl.u32 %v418, 7
    %v420 = vsub.s32 0, %v419
    %v421 = vrot.slane %v416, %v420
    %v424 = vsel %vm43, %v411, 0
    %426 = vmatprep.subr.mxu0 0.0
    %427 = vmatpush1.msra.mxu0 %v412
    %428 = vmatprep.subr.mxu0 0.0
    %429 = vmatpush1.msra.mxu0 %v413
    %430 = vmatprep.subr.mxu0 0.0
    %431 = vmatpush1.msra.mxu0 %v414
    %432 = vmatprep.subr.mxu0 0.0
    %433 = vmatpush1.msra.mxu0 %v415
    %434 = vmatprep.subr.mxu0 0.0
    %435 = vmatpush1.msra.mxu0 0.0
    %436 = vmatprep.subr.mxu0 0.0
    %437 = vmatpush1.msra.mxu0 0.0
    %438 = vmatprep.subr.mxu0 0.0
    %439 = vmatpush1.msra.mxu0 0.0
    %440 = vmatprep.subr.mxu0 0.0
    %441 = vmatpush1.msra.mxu0 0.0
    %442 = vmatprep.subr.mxu0 0.0
    %443 = vmatpush1.msra.mxu0 0.0
    %444 = vmatprep.subr.mxu0 0.0
    %445 = vmatpush1.msra.mxu0 0.0
    %446 = vmatprep.subr.mxu0 0.0
    %447 = vmatpush1.msra.mxu0 0.0
    %448 = vmatprep.subr.mxu0 0.0
    %449 = vmatpush1.msra.mxu0 0.0
    %450 = vmatprep.subr.mxu0 0.0
    %451 = vmatpush1.msra.mxu0 0.0
    %452 = vmatprep.subr.mxu0 0.0
    %453 = vmatpush1.msra.mxu0 0.0
    %454 = vmatprep.subr.mxu0 0.0
    %455 = vmatpush1.msra.mxu0 0.0
    %456 = vmatprep.subr.mxu0 0.0
    %457 = vmatpush1.msra.mxu0 0.0
    %458 = vmatprep.subr.mxu0 0.0
    %459 = vmatpush1.msra.mxu0 0.0
    %460 = vmatprep.subr.mxu0 0.0
    %461 = vmatpush1.msra.mxu0 0.0
    %462 = vmatprep.subr.mxu0 0.0
    %463 = vmatpush1.msra.mxu0 0.0
    %464 = vmatprep.subr.mxu0 0.0
    %465 = vmatpush1.msra.mxu0 0.0
    %466 = vmatprep.subr.mxu0 0.0
    %467 = vmatpush1.msra.mxu0 0.0
    %468 = vmatprep.subr.mxu0 0.0
    %469 = vmatpush1.msra.mxu0 0.0
    %470 = vmatprep.subr.mxu0 0.0
    %471 = vmatpush1.msra.mxu0 0.0
    %472 = vmatprep.subr.mxu0 0.0
    %473 = vmatpush1.msra.mxu0 0.0
    %474 = vmatprep.subr.mxu0 0.0
    %475 = vmatpush1.msra.mxu0 0.0
    %476 = vmatprep.subr.mxu0 0.0
    %477 = vmatpush1.msra.mxu0 0.0
    %478 = vmatprep.subr.mxu0 0.0
    %479 = vmatpush1.msra.mxu0 0.0
    %480 = vmatprep.subr.mxu0 0.0
    %481 = vmatpush1.msra.mxu0 0.0
    %482 = vmatprep.subr.mxu0 0.0
    %483 = vmatpush1.msra.mxu0 0.0
    %484 = vmatprep.subr.mxu0 0.0
    %485 = vmatpush1.msra.mxu0 0.0
    %486 = vmatprep.subr.mxu0 0.0
    %487 = vmatpush1.msra.mxu0 0.0
    %488 = vmatprep.subr.mxu0 0.0
    %489 = vmatpush1.msra.mxu0 0.0
    %490 = vmatprep.mubr.f32.mxu0 0.0
    %491 = vmatmul.mubr.f32.gmra.mrb[0].mxu0 %v424
    %v492 = vpop.f32.mrb[0].mxu0
    %v493 = vadd.f32 %v421, %v492
    %v494 = vpop.f32.mrb[0].mxu0
    %495 = vdwg.mxu0
    %v496 = vmul.f32 %v493, 0.2
    %v497 = vmax.f32 %v493, %v496
    %502 = vrot.lane.b32.xlu0 %v412, 96
    %v503 = vpop.permute.xlu0 %502
    %504 = vrot.lane.b32.xlu0 %v413, 96
    %v505 = vpop.permute.xlu0 %504
    %506 = vrot.lane.b32.xlu0 %v414, 96
    %v507 = vpop.permute.xlu0 %506
    %508 = vrot.lane.b32.xlu0 %v415, 96
    %v509 = vpop.permute.xlu0 %508
    %514 = vrot.lane.b32.xlu0 %v421, 96
    %v515 = vpop.permute.xlu0 %514
    %v518 = vsel %vm43, %v497, 0
    %520 = vmatprep.subr.mxu0 0.0
    %521 = vmatpush1.msra.mxu0 %v503
    %522 = vmatprep.subr.mxu0 0.0
    %523 = vmatpush1.msra.mxu0 %v505
    %524 = vmatprep.subr.mxu0 0.0
    %525 = vmatpush1.msra.mxu0 %v507
    %526 = vmatprep.subr.mxu0 0.0
    %527 = vmatpush1.msra.mxu0 %v509
    %528 = vmatprep.subr.mxu0 0.0
    %529 = vmatpush1.msra.mxu0 0.0
    %530 = vmatprep.subr.mxu0 0.0
    %531 = vmatpush1.msra.mxu0 0.0
    %532 = vmatprep.subr.mxu0 0.0
    %533 = vmatpush1.msra.mxu0 0.0
    %534 = vmatprep.subr.mxu0 0.0
    %535 = vmatpush1.msra.mxu0 0.0
    %536 = vmatprep.subr.mxu0 0.0
    %537 = vmatpush1.msra.mxu0 0.0
    %538 = vmatprep.subr.mxu0 0.0
    %539 = vmatpush1.msra.mxu0 0.0
    %540 = vmatprep.subr.mxu0 0.0
    %541 = vmatpush1.msra.mxu0 0.0
    %542 = vmatprep.subr.mxu0 0.0
    %543 = vmatpush1.msra.mxu0 0.0
    %544 = vmatprep.subr.mxu0 0.0
    %545 = vmatpush1.msra.mxu0 0.0
    %546 = vmatprep.subr.mxu0 0.0
    %547 = vmatpush1.msra.mxu0 0.0
    %548 = vmatprep.subr.mxu0 0.0
    %549 = vmatpush1.msra.mxu0 0.0
    %550 = vmatprep.subr.mxu0 0.0
    %551 = vmatpush1.msra.mxu0 0.0
    %552 = vmatprep.subr.mxu0 0.0
    %553 = vmatpush1.msra.mxu0 0.0
    %554 = vmatprep.subr.mxu0 0.0
    %555 = vmatpush1.msra.mxu0 0.0
    %556 = vmatprep.subr.mxu0 0.0
    %557 = vmatpush1.msra.mxu0 0.0
    %558 = vmatprep.subr.mxu0 0.0
    %559 = vmatpush1.msra.mxu0 0.0
    %560 = vmatprep.subr.mxu0 0.0
    %561 = vmatpush1.msra.mxu0 0.0
    %562 = vmatprep.subr.mxu0 0.0
    %563 = vmatpush1.msra.mxu0 0.0
    %564 = vmatprep.subr.mxu0 0.0
    %565 = vmatpush1.msra.mxu0 0.0
    %566 = vmatprep.subr.mxu0 0.0
    %567 = vmatpush1.msra.mxu0 0.0
    %568 = vmatprep.subr.mxu0 0.0
    %569 = vmatpush1.msra.mxu0 0.0
    %570 = vmatprep.subr.mxu0 0.0
    %571 = vmatpush1.msra.mxu0 0.0
    %572 = vmatprep.subr.mxu0 0.0
    %573 = vmatpush1.msra.mxu0 0.0
    %574 = vmatprep.subr.mxu0 0.0
    %575 = vmatpush1.msra.mxu0 0.0
    %576 = vmatprep.subr.mxu0 0.0
    %577 = vmatpush1.msra.mxu0 0.0
    %578 = vmatprep.subr.mxu0 0.0
    %579 = vmatpush1.msra.mxu0 0.0
    %580 = vmatprep.subr.mxu0 0.0
    %581 = vmatpush1.msra.mxu0 0.0
    %582 = vmatprep.subr.mxu0 0.0
    %583 = vmatpush1.msra.mxu0 0.0
    %584 = vmatprep.mubr.f32.mxu0 0.0
    %585 = vmatmul.mubr.f32.gmra.mrb[0].mxu0 %v518
    %v586 = vpop.f32.mrb[0].mxu0
    %v587 = vadd.f32 %v515, %v586
    %v588 = vpop.f32.mrb[0].mxu0
    %589 = vdwg.mxu0
    %v590 = vmul.f32 %v587, 0.2
    %v591 = vmax.f32 %v587, %v590
    %592 = vrot.lane.b32.xlu0 %v412, 64
    %v593 = vpop.permute.xlu0 %592
    %594 = vrot.lane.b32.xlu0 %v413, 64
    %v595 = vpop.permute.xlu0 %594
    %596 = vrot.lane.b32.xlu0 %v414, 64
    %v597 = vpop.permute.xlu0 %596
    %598 = vrot.lane.b32.xlu0 %v415, 64
    %v599 = vpop.permute.xlu0 %598
    %604 = vrot.lane.b32.xlu0 %v421, 64
    %v605 = vpop.permute.xlu0 %604
    %v608 = vsel %vm43, %v591, 0
    %610 = vmatprep.subr.mxu0 0.0
    %611 = vmatpush1.msra.mxu0 %v593
    %612 = vmatprep.subr.mxu0 0.0
    %613 = vmatpush1.msra.mxu0 %v595
    %614 = vmatprep.subr.mxu0 0.0
    %615 = vmatpush1.msra.mxu0 %v597
    %616 = vmatprep.subr.mxu0 0.0
    %617 = vmatpush1.msra.mxu0 %v599
    %618 = vmatprep.subr.mxu0 0.0
    %619 = vmatpush1.msra.mxu0 0.0
    %620 = vmatprep.subr.mxu0 0.0
    %621 = vmatpush1.msra.mxu0 0.0
    %622 = vmatprep.subr.mxu0 0.0
    %623 = vmatpush1.msra.mxu0 0.0
    %624 = vmatprep.subr.mxu0 0.0
    %625 = vmatpush1.msra.mxu0 0.0
    %626 = vmatprep.subr.mxu0 0.0
    %627 = vmatpush1.msra.mxu0 0.0
    %628 = vmatprep.subr.mxu0 0.0
    %629 = vmatpush1.msra.mxu0 0.0
    %630 = vmatprep.subr.mxu0 0.0
    %631 = vmatpush1.msra.mxu0 0.0
    %632 = vmatprep.subr.mxu0 0.0
    %633 = vmatpush1.msra.mxu0 0.0
    %634 = vmatprep.subr.mxu0 0.0
    %635 = vmatpush1.msra.mxu0 0.0
    %636 = vmatprep.subr.mxu0 0.0
    %637 = vmatpush1.msra.mxu0 0.0
    %638 = vmatprep.subr.mxu0 0.0
    %639 = vmatpush1.msra.mxu0 0.0
    %640 = vmatprep.subr.mxu0 0.0
    %641 = vmatpush1.msra.mxu0 0.0
    %642 = vmatprep.subr.mxu0 0.0
    %643 = vmatpush1.msra.mxu0 0.0
    %644 = vmatprep.subr.mxu0 0.0
    %645 = vmatpush1.msra.mxu0 0.0
    %646 = vmatprep.subr.mxu0 0.0
    %647 = vmatpush1.msra.mxu0 0.0
    %648 = vmatprep.subr.mxu0 0.0
    %649 = vmatpush1.msra.mxu0 0.0
    %650 = vmatprep.subr.mxu0 0.0
    %651 = vmatpush1.msra.mxu0 0.0
    %652 = vmatprep.subr.mxu0 0.0
    %653 = vmatpush1.msra.mxu0 0.0
    %654 = vmatprep.subr.mxu0 0.0
    %655 = vmatpush1.msra.mxu0 0.0
    %656 = vmatprep.subr.mxu0 0.0
    %657 = vmatpush1.msra.mxu0 0.0
    %658 = vmatprep.subr.mxu0 0.0
    %659 = vmatpush1.msra.mxu0 0.0
    %660 = vmatprep.subr.mxu0 0.0
    %661 = vmatpush1.msra.mxu0 0.0
    %662 = vmatprep.subr.mxu0 0.0
    %663 = vmatpush1.msra.mxu0 0.0
    %664 = vmatprep.subr.mxu0 0.0
    %665 = vmatpush1.msra.mxu0 0.0
    %666 = vmatprep.subr.mxu0 0.0
    %667 = vmatpush1.msra.mxu0 0.0
    %668 = vmatprep.subr.mxu0 0.0
    %669 = vmatpush1.msra.mxu0 0.0
    %670 = vmatprep.subr.mxu0 0.0
    %671 = vmatpush1.msra.mxu0 0.0
    %672 = vmatprep.subr.mxu0 0.0
    %673 = vmatpush1.msra.mxu0 0.0
    %674 = vmatprep.mubr.f32.mxu0 0.0
    %675 = vmatmul.mubr.f32.gmra.mrb[0].mxu0 %v608
    %v676 = vpop.f32.mrb[0].mxu0
    %v677 = vadd.f32 %v605, %v676
    %v678 = vpop.f32.mrb[0].mxu0
    %679 = vdwg.mxu0
    %v680 = vmul.f32 %v677, 0.2
    %v681 = vmax.f32 %v677, %v680
    %v682 = vld [vmem:[#allocation5 + $0x8] sm:$0xff]
    %v683 = vld [vmem:[#allocation5 + $0x10] sm:$0xff]
    %v684 = vld [vmem:[#allocation5 + $0x20] sm:$0xff]
    %v685 = vld [vmem:[#allocation5 + $0x28] sm:$0xff]
    %v686 = vld [vmem:[#allocation5 + $0x38] sm:$0xff]
    %v687 = vld [vmem:[#allocation5 + $0x40] sm:$0xff]
    %v688 = vld [vmem:[#allocation5 + $0x50] sm:$0xff]
    %v689 = vld [vmem:[#allocation5 + $0x58] sm:$0xff]
    %v690 = vld [vmem:[%s2 + $0x1] sm:$0x3]
    %v692 = vlaneseq
    %v693 = vshrl.u32 %v692, 7
    %v694 = vsub.s32 0, %v693
    %v695 = vrot.slane %v690, %v694
    %v696 = vlaneseq
    %v697 = vshrl.u32 %v696, 7
    %v698 = vsub.s32 1, %v697
    %v699 = vrot.slane %v690, %v698
    %708 = vrot.lane.b32.xlu0 %v682, 32
    %v709 = vpop.permute.xlu0 %708
    %710 = vrot.lane.b32.xlu0 %v683, 32
    %v711 = vpop.permute.xlu0 %710
    %712 = vrot.lane.b32.xlu0 %v684, 32
    %v713 = vpop.permute.xlu0 %712
    %714 = vrot.lane.b32.xlu0 %v685, 32
    %v715 = vpop.permute.xlu0 %714
    %716 = vrot.lane.b32.xlu0 %v686, 32
    %v717 = vpop.permute.xlu0 %716
    %718 = vrot.lane.b32.xlu0 %v687, 32
    %v719 = vpop.permute.xlu0 %718
    %720 = vrot.lane.b32.xlu0 %v688, 32
    %v721 = vpop.permute.xlu0 %720
    %722 = vrot.lane.b32.xlu0 %v689, 32
    %v723 = vpop.permute.xlu0 %722
    %v724 = vsel %vm43, %v709, %v711
    %v725 = vsel %vm43, %v713, %v715
    %v726 = vsel %vm43, %v717, %v719
    %v727 = vsel %vm43, %v721, %v723
    %732 = vrot.lane.b32.xlu0 %v695, 32
    %v733 = vpop.permute.xlu0 %732
    %734 = vrot.lane.b32.xlu0 %v699, 32
    %v735 = vpop.permute.xlu0 %734
    %v736 = vsel %vm43, %v733, %v735
    %v739 = vsel %vm43, %v681, 0
    %741 = vmatprep.subr.mxu0 0.0
    %742 = vmatpush1.msra.mxu0 %v724
    %743 = vmatprep.subr.mxu0 0.0
    %744 = vmatpush1.msra.mxu0 %v725
    %745 = vmatprep.subr.mxu0 0.0
    %746 = vmatpush1.msra.mxu0 %v726
    %747 = vmatprep.subr.mxu0 0.0
    %748 = vmatpush1.msra.mxu0 %v727
    %749 = vmatprep.subr.mxu0 0.0
    %750 = vmatpush1.msra.mxu0 0.0
    %751 = vmatprep.subr.mxu0 0.0
    %752 = vmatpush1.msra.mxu0 0.0
    %753 = vmatprep.subr.mxu0 0.0
    %754 = vmatpush1.msra.mxu0 0.0
    %755 = vmatprep.subr.mxu0 0.0
    %756 = vmatpush1.msra.mxu0 0.0
    %757 = vmatprep.subr.mxu0 0.0
    %758 = vmatpush1.msra.mxu0 0.0
    %759 = vmatprep.subr.mxu0 0.0
    %760 = vmatpush1.msra.mxu0 0.0
    %761 = vmatprep.subr.mxu0 0.0
    %762 = vmatpush1.msra.mxu0 0.0
    %763 = vmatprep.subr.mxu0 0.0
    %764 = vmatpush1.msra.mxu0 0.0
    %765 = vmatprep.subr.mxu0 0.0
    %766 = vmatpush1.msra.mxu0 0.0
    %767 = vmatprep.subr.mxu0 0.0
    %768 = vmatpush1.msra.mxu0 0.0
    %769 = vmatprep.subr.mxu0 0.0
    %770 = vmatpush1.msra.mxu0 0.0
    %771 = vmatprep.subr.mxu0 0.0
    %772 = vmatpush1.msra.mxu0 0.0
    %773 = vmatprep.subr.mxu0 0.0
    %774 = vmatpush1.msra.mxu0 0.0
    %775 = vmatprep.subr.mxu0 0.0
    %776 = vmatpush1.msra.mxu0 0.0
    %777 = vmatprep.subr.mxu0 0.0
    %778 = vmatpush1.msra.mxu0 0.0
    %779 = vmatprep.subr.mxu0 0.0
    %780 = vmatpush1.msra.mxu0 0.0
    %781 = vmatprep.subr.mxu0 0.0
    %782 = vmatpush1.msra.mxu0 0.0
    %783 = vmatprep.subr.mxu0 0.0
    %784 = vmatpush1.msra.mxu0 0.0
    %785 = vmatprep.subr.mxu0 0.0
    %786 = vmatpush1.msra.mxu0 0.0
    %787 = vmatprep.subr.mxu0 0.0
    %788 = vmatpush1.msra.mxu0 0.0
    %789 = vmatprep.subr.mxu0 0.0
    %790 = vmatpush1.msra.mxu0 0.0
    %791 = vmatprep.subr.mxu0 0.0
    %792 = vmatpush1.msra.mxu0 0.0
    %793 = vmatprep.subr.mxu0 0.0
    %794 = vmatpush1.msra.mxu0 0.0
    %795 = vmatprep.subr.mxu0 0.0
    %796 = vmatpush1.msra.mxu0 0.0
    %797 = vmatprep.subr.mxu0 0.0
    %798 = vmatpush1.msra.mxu0 0.0
    %799 = vmatprep.subr.mxu0 0.0
    %800 = vmatpush1.msra.mxu0 0.0
    %801 = vmatprep.subr.mxu0 0.0
    %802 = vmatpush1.msra.mxu0 0.0
    %803 = vmatprep.subr.mxu0 0.0
    %804 = vmatpush1.msra.mxu0 0.0
    %805 = vmatprep.mubr.f32.mxu0 0.0
    %806 = vmatmul.mubr.f32.gmra.mrb[0].mxu0 %v739
    %v807 = vpop.f32.mrb[0].mxu0
    %v808 = vadd.f32 %v736, %v807
    %v809 = vpop.f32.mrb[0].mxu0
    %810 = vdwg.mxu0
    %v811 = vmul.f32 %v808, 0.2
    %v812 = vmax.f32 %v808, %v811
    %813 = vst [vmem:[#allocation7] sm:$0xff] %v812
    // Predicated region
    $region22: #{tpu_custom_call.1} parent=1 // pred_check
      _
    $region23: #{tpu_custom_call.1} parent=1 // pred_check_branch
      %815 = sbr.rel (0) target = $region25
    $region24: #{tpu_custom_call.1} parent=1 // pred_region
      %s817 = ssub.s32 128, 128
      %818 = vsyncadd [#allocation4], %s817
      %s820 = sshll.u32 [#allocation7], 4
      %s821 = int_to_ptr.vmem [resolvable:$true] %s820
      %823 = dma.vmem_to_hbm [thread:$0]  %s821, 128, %s3, [#allocation4]
    $region25: #{tpu_custom_call.1} parent=1 // pred_fallthru
      _
    // Predicated region
    $region26: #{tpu_custom_call.1} parent=1 // pred_check
      _
    $region27: #{tpu_custom_call.1} parent=1 // pred_check_branch
      %825 = sbr.rel (0) target = $region29
    $region28: #{tpu_custom_call.1} parent=1 // pred_region
      %826 = dma.done [#allocation4], 128
    $region29: #{tpu_custom_call.1} parent=1 // pred_fallthru
      _
    %827 = vsyncpa [#allocation3], 1
    %828 = vsyncpa [#allocation6], 1
    %829 = vsyncpa [#allocation4], 1

</llo_original>
